<compile_context>
chip_gen: v7x
topology: tpu7x:2x2x1
jax: 0.10.0
libtpu: 0.0.40
codegen_flags: <defaults>
</compile_context>

<pallas_src>
import functools

import jax
import jax.numpy as jnp
from jax.experimental import pallas as pl
from jax.experimental.pallas import tpu as pltpu


# ---------------------------------------------------------------------------
# Kernels
# ---------------------------------------------------------------------------
def _resblock_fused_kernel(x_ref, w1_ref, b1_ref, w2_ref, b2_ref, o_ref):
    """Grid = (batch tiles,).  Both weight matrices are VMEM-resident."""
    x = x_ref[...]                                           # (bb, Dp) f32
    h = jnp.dot(x.astype(jnp.bfloat16), w1_ref[...],
                preferred_element_type=jnp.float32)
    h = jnp.maximum(h + b1_ref[...], 0.0)
    y = jnp.dot(h.astype(jnp.bfloat16), w2_ref[...],
                preferred_element_type=jnp.float32)
    y = jnp.maximum(y + b2_ref[...], 0.0)
    o_ref[...] = y + x                                       # residual in f32


def _resblock_streamed_kernel(x_ref, w1_ref, b1_ref, w2_ref, b2_ref, o_ref,
                              xbf_ref):
    """Grid = (batch tiles [parallel], hidden-dim tiles [arbitrary]).

    Partial sums accumulate directly into the f32 output tile (its block index
    is constant along k, so it is VMEM-resident across the reduction); x is
    cast to bf16 once per batch tile (k == 0) into xbf_ref.
    """
    k = pl.program_id(1)

    @pl.when(k == 0)
    def _():
        xbf_ref[...] = x_ref[...].astype(jnp.bfloat16)       # hoisted cast
        o_ref[...] = jnp.zeros_like(o_ref)

    # Layer 1, hidden slice k:  relu(x @ W1[:, k] + b1[k])   (f32 acc)
    h = jnp.dot(xbf_ref[...], w1_ref[...], preferred_element_type=jnp.float32)
    h = jnp.maximum(h + b1_ref[...], 0.0)
    # Layer 2 partial sum directly into the resident output tile.
    o_ref[...] += jnp.dot(h.astype(jnp.bfloat16), w2_ref[...],
                          preferred_element_type=jnp.float32)

    @pl.when(k == pl.num_programs(1) - 1)
    def _():
        y = jnp.maximum(o_ref[...] + b2_ref[...], 0.0)
        o_ref[...] = y + x_ref[...]                          # residual in f32


# ---------------------------------------------------------------------------
# Config helpers
# ---------------------------------------------------------------------------
def _round_up(x, m):
    return (x + m - 1) // m * m


def _pad2d(a, rows, cols):
    r, c = a.shape
    if (r, c) == (rows, cols):
        return a
    return jnp.zeros((rows, cols), a.dtype).at[:r, :c].set(a)


def _vmem_budget_bytes():
    """~80% of physical per-core VMEM (~51 MiB on v7x, ~102 MiB on v5e/v6e)."""
    cap = None
    try:
        info = pltpu.get_tpu_info()
        for name in ("vmem_capacity_bytes", "vmem_bytes", "vmem_size_bytes"):
            v = getattr(info, name, None)
            if v:
                cap = int(v)
                break
    except Exception:
        cap = None
    if cap is None:
        cap = 64 * 1024 * 1024  # conservative fallback (v7x per-TC size)
    return int(cap * 0.8)


def _fused_vmem_bytes(bb, Dp):
    # double-buffered bf16 W1+W2 (8*Dp^2) + double-buffered f32 x/out tiles
    # (16*bb*Dp) + f32 h temp (4*bb*Dp) + slack for biases.
    return 8 * Dp * Dp + 20 * bb * Dp + (1 << 16)


def _streamed_vmem_bytes(bb, bk, Dp):
    # double-buffered bf16 W1/W2 slices (8*Dp*bk) + double-buffered f32 x/out
    # tiles (16*bb*Dp) + bf16 x scratch (2*bb*Dp) + f32 h temp (4*bb*bk).
    return 8 * Dp * bk + 18 * bb * Dp + 4 * bb * bk + (1 << 16)


def _choose_config(B, Dp, budget, block_b, block_k):
    """Pick (block_b, block_k, streamed).  block_k == Dp <=> fused mode."""
    user_bb, user_bk = block_b, block_k
    if user_bk is not None:
        assert Dp % user_bk == 0, "block_k must divide the padded feature dim"

    # -------- fused / resident-weight mode (preferred) --------
    if user_bk is None or user_bk == Dp:
        bb = (_round_up(user_bb, 8) if user_bb is not None
              else min(256, _round_up(B, 8)))
        if user_bb is None:
            # >=2 batch tiles when B allows -> both v7x TensorCores get work.
            while _round_up(B, bb) // bb < 2 and bb > 8:
                bb = max(8, _round_up(bb // 2, 8))
            # Shrink until resident weights + activation tiles fit the budget.
            while _fused_vmem_bytes(bb, Dp) > budget and bb > 8:
                bb = max(8, _round_up(bb // 2, 8))
        if user_bk == Dp or _fused_vmem_bytes(bb, Dp) <= budget:
            return bb, Dp, False

    # -------- streamed (hidden-dim tiled) mode --------
    # Arithmetic intensity ~= block_b when weight streaming dominates; aim
    # high, using the VMEM budget as a generation proxy.
    target_bb = 1024 if budget >= 80 * 1024 * 1024 else 512
    bb = (_round_up(user_bb, 8) if user_bb is not None
          else min(target_bb, _round_up(B, 8)))
    bk = user_bk if user_bk is not None else (
        512 if Dp % 512 == 0 else 256 if Dp % 256 == 0 else 128)
    if user_bb is None:
        # >=2 batch tiles for v7x, but never below 256 rows (intensity floor).
        while _round_up(B, bb) // bb < 2 and bb // 2 >= 256:
            bb = _round_up(bb // 2, 8)
        while _streamed_vmem_bytes(bb, bk, Dp) > budget and bb // 2 >= 256:
            bb = _round_up(bb // 2, 8)
    if user_bk is None:
        while _streamed_vmem_bytes(bb, bk, Dp) > budget and bk > 128:
            bk //= 2
    if user_bb is None:
        while _streamed_vmem_bytes(bb, bk, Dp) > budget and bb > 8:
            bb = max(8, _round_up(bb // 2, 8))
    return bb, bk, True


# ---------------------------------------------------------------------------
# Wrapper
# ---------------------------------------------------------------------------
@functools.partial(jax.jit, static_argnames=("block_b", "block_k"))
def residual_block(x, w1, b1, w2, b2, *, block_b=None, block_k=None):
    """x: (B, D); w1, w2: (D, D) laid out as (in, out); b1, b2: (D,)."""
    B, D = x.shape
    f32 = jnp.float32

    Dp = _round_up(D, 128)                     # lane-dense feature dim
    budget = _vmem_budget_bytes()
    bb, bk, streamed = _choose_config(B, Dp, budget, block_b, block_k)
    Bp = _round_up(B, bb)

    xp = _pad2d(x.astype(f32), Bp, Dp)
    w1p = _pad2d(w1.astype(f32), Dp, Dp).astype(jnp.bfloat16)
    w2p = _pad2d(w2.astype(f32), Dp, Dp).astype(jnp.bfloat16)
    b1p = _pad2d(b1.astype(f32).reshape(1, D), 1, Dp)
    b2p = _pad2d(b2.astype(f32).reshape(1, D), 1, Dp)

    n_btiles = Bp // bb
    weight_bytes = 2 * Dp * Dp * 2             # both matrices, bf16
    bytes_accessed = (xp.size * 4 + Bp * Dp * 4
                      + weight_bytes * (n_btiles if streamed else 1)
                      + b1p.size * 4 + b2p.size * 4)
    cost = pl.CostEstimate(flops=4 * Bp * Dp * Dp, transcendentals=0,
                           bytes_accessed=bytes_accessed)
    compiler_params = pltpu.CompilerParams(
        dimension_semantics=(("parallel", "arbitrary") if streamed
                             else ("parallel",)),
        vmem_limit_bytes=budget,
    )

    if streamed:
        grid_spec = pltpu.PrefetchScalarGridSpec(
            num_scalar_prefetch=0,
            grid=(n_btiles, Dp // bk),
            in_specs=[
                pl.BlockSpec((bb, Dp), lambda i, k: (i, 0)),   # x (resident over k)
                pl.BlockSpec((Dp, bk), lambda i, k: (0, k)),   # W1[:, k]
                pl.BlockSpec((1, bk), lambda i, k: (0, k)),    # b1[k]
                pl.BlockSpec((bk, Dp), lambda i, k: (k, 0)),   # W2[k, :]
                pl.BlockSpec((1, Dp), lambda i, k: (0, 0)),    # b2
            ],
            out_specs=pl.BlockSpec((bb, Dp), lambda i, k: (i, 0)),
            scratch_shapes=[pltpu.VMEM((bb, Dp), jnp.bfloat16)],  # hoisted bf16 x
        )
        kernel = _resblock_streamed_kernel
    else:
        grid_spec = pltpu.PrefetchScalarGridSpec(
            num_scalar_prefetch=0,
            grid=(n_btiles,),
            in_specs=[
                pl.BlockSpec((bb, Dp), lambda i: (i, 0)),      # x
                pl.BlockSpec((Dp, Dp), lambda i: (0, 0)),      # W1 (resident)
                pl.BlockSpec((1, Dp), lambda i: (0, 0)),       # b1
                pl.BlockSpec((Dp, Dp), lambda i: (0, 0)),      # W2 (resident)
                pl.BlockSpec((1, Dp), lambda i: (0, 0)),       # b2
            ],
            out_specs=pl.BlockSpec((bb, Dp), lambda i: (i, 0)),
        )
        kernel = _resblock_fused_kernel

    out = pl.pallas_call(
        kernel,
        out_shape=jax.ShapeDtypeStruct((Bp, Dp), jnp.float32),
        grid_spec=grid_spec,
        compiler_params=compiler_params,
        cost_estimate=cost,
    )(xp, w1p, b1p, w2p, b2p)

    if (Bp, Dp) != (B, D):
        out = out[:B, :D]
    return out.astype(x.dtype)


def reference(x, w1, b1, w2, b2):
    h = jnp.maximum(x @ w1 + b1, 0.0)
    h = jnp.maximum(h @ w2 + b2, 0.0)
    return h + x


if __name__ == "__main__":
    key = jax.random.PRNGKey(0)
    # (8, 32):            module-scale shapes, fused path + zero-pad to 128.
    # (128, 256):         fused resident-weight path, >=2-step parallel grid.
    # (64, 256, bk=128):  forces the streamed (hidden-tiled) path.
    cases = [((8, 32), None), ((128, 256), None), ((64, 256), 128)]
    for (B, D), bk in cases:
        kx, k1, kb1, k2, kb2 = jax.random.split(
            jax.random.fold_in(key, B * 1000 + D), 5)
        x = jax.random.normal(kx, (B, D), dtype=jnp.float32)
        # PyTorch-like uniform(-1/sqrt(D), 1/sqrt(D)), stored in (in, out)
        # layout so the kernel computes x @ W + b (== x @ W.T + b in torch).
        bound = 1.0 / jnp.sqrt(jnp.float32(D))
        w1 = jax.random.uniform(k1, (D, D), jnp.float32, -bound, bound)
        b1 = jax.random.uniform(kb1, (D,), jnp.float32, -bound, bound)
        w2 = jax.random.uniform(k2, (D, D), jnp.float32, -bound, bound)
        b2 = jax.random.uniform(kb2, (D,), jnp.float32, -bound, bound)

        out = jax.block_until_ready(
            residual_block(x, w1, b1, w2, b2, block_k=bk))
        ref = reference(x, w1, b1, w2, b2)
        assert out.shape == (B, D)
        # bf16 matmul inputs with f32 accumulation -> loosened tolerance.
        err = float(jnp.max(jnp.abs(out - ref)))
        assert jnp.allclose(out, ref, atol=5e-2, rtol=5e-2), (B, D, err)

    print("KERNEL_OK")
</pallas_src>

<mosaic_0001>
module attributes {stable_mosaic.version = 11 : i64} {
  func.func @_resblock_fused_kernel(%arg0: i32, %arg1: memref<8x128xf32, #tpu.memory_space<vmem>>, %arg2: memref<128x128xbf16, #tpu.memory_space<vmem>>, %arg3: memref<1x128xf32, #tpu.memory_space<vmem>>, %arg4: memref<128x128xbf16, #tpu.memory_space<vmem>>, %arg5: memref<1x128xf32, #tpu.memory_space<vmem>>, %arg6: memref<8x128xf32, #tpu.memory_space<vmem>>) attributes {dimension_semantics = [#tpu.dimension_semantics<parallel>], iteration_bounds = array<i64: 1>, scalar_prefetch = 0 : i64, scratch_operands = 0 : i64, tpu.core_type = #tpu.core_type<tc>, window_params = [{transform_indices = @transform_0, window_bounds = array<i64: 8, 128>}, {pipeline_mode = #tpu.pipeline_mode<synchronous>, transform_indices = @transform_1, window_bounds = array<i64: 128, 128>}, {pipeline_mode = #tpu.pipeline_mode<synchronous>, transform_indices = @transform_2, window_bounds = array<i64: 1, 128>}, {pipeline_mode = #tpu.pipeline_mode<synchronous>, transform_indices = @transform_3, window_bounds = array<i64: 128, 128>}, {pipeline_mode = #tpu.pipeline_mode<synchronous>, transform_indices = @transform_4, window_bounds = array<i64: 1, 128>}, {transform_indices = @transform_5, window_bounds = array<i64: 8, 128>}]} {
    %c0 = arith.constant 0 : index
    %c0_0 = arith.constant 0 : index
    %0 = vector.load %arg1[%c0, %c0_0] : memref<8x128xf32, #tpu.memory_space<vmem>>, vector<8x128xf32>
    %1 = arith.truncf %0 : vector<8x128xf32> to vector<8x128xbf16>
    %c0_1 = arith.constant 0 : index
    %c0_2 = arith.constant 0 : index
    %2 = vector.load %arg2[%c0_1, %c0_2] : memref<128x128xbf16, #tpu.memory_space<vmem>>, vector<128x128xbf16>
    %cst = arith.constant dense<0.000000e+00> : vector<8x128xf32>
    %3 = tpu.matmul %1, %2, %cst {dimension_numbers = #tpu.dot_dimension_numbers<[1], [0], [0], [1], [0, 0, 1, 1], [], []>} : vector<8x128xbf16>, vector<128x128xbf16>, vector<8x128xf32> -> vector<8x128xf32>
    %c0_3 = arith.constant 0 : index
    %c0_4 = arith.constant 0 : index
    %4 = vector.load %arg3[%c0_3, %c0_4] : memref<1x128xf32, #tpu.memory_space<vmem>>, vector<1x128xf32>
    %5 = vector.broadcast %4 : vector<1x128xf32> to vector<8x128xf32>
    %6 = arith.addf %3, %5 : vector<8x128xf32>
    %cst_5 = arith.constant 0.000000e+00 : f32
    %7 = vector.broadcast %cst_5 : f32 to vector<8x128xf32>
    %8 = arith.maximumf %6, %7 : vector<8x128xf32>
    %9 = arith.truncf %8 : vector<8x128xf32> to vector<8x128xbf16>
    %c0_6 = arith.constant 0 : index
    %c0_7 = arith.constant 0 : index
    %10 = vector.load %arg4[%c0_6, %c0_7] : memref<128x128xbf16, #tpu.memory_space<vmem>>, vector<128x128xbf16>
    %cst_8 = arith.constant dense<0.000000e+00> : vector<8x128xf32>
    %11 = tpu.matmul %9, %10, %cst_8 {dimension_numbers = #tpu.dot_dimension_numbers<[1], [0], [0], [1], [0, 0, 1, 1], [], []>} : vector<8x128xbf16>, vector<128x128xbf16>, vector<8x128xf32> -> vector<8x128xf32>
    %c0_9 = arith.constant 0 : index
    %c0_10 = arith.constant 0 : index
    %12 = vector.load %arg5[%c0_9, %c0_10] : memref<1x128xf32, #tpu.memory_space<vmem>>, vector<1x128xf32>
    %13 = vector.broadcast %12 : vector<1x128xf32> to vector<8x128xf32>
    %14 = arith.addf %11, %13 : vector<8x128xf32>
    %cst_11 = arith.constant 0.000000e+00 : f32
    %15 = vector.broadcast %cst_11 : f32 to vector<8x128xf32>
    %16 = arith.maximumf %14, %15 : vector<8x128xf32>
    %17 = arith.addf %16, %0 : vector<8x128xf32>
    %c0_12 = arith.constant 0 : index
    %c0_13 = arith.constant 0 : index
    %18 = vector.load %arg6[%c0_12, %c0_13] : memref<8x128xf32, #tpu.memory_space<vmem>>, vector<8x128xf32>
    tpu.vector_store %arg6[%c0_12, %c0_13], %17 {strides = array<i32>} : memref<8x128xf32, #tpu.memory_space<vmem>>, vector<8x128xf32>,
    return
  }
  func.func @transform_0(%arg0: i32) -> (i32, i32) {
    %c0_i32 = arith.constant 0 : i32
    %c0_i32_0 = arith.constant 0 : i32
    return %arg0, %c0_i32 : i32, i32
  }
  func.func @transform_1(%arg0: i32) -> (i32, i32) {
    %c0_i32 = arith.constant 0 : i32
    %c0_i32_0 = arith.constant 0 : i32
    %c0_i32_1 = arith.constant 0 : i32
    return %c0_i32, %c0_i32_0 : i32, i32
  }
  func.func @transform_2(%arg0: i32) -> (i32, i32) {
    %c0_i32 = arith.constant 0 : i32
    %c0_i32_0 = arith.constant 0 : i32
    %c0_i32_1 = arith.constant 0 : i32
    return %c0_i32, %c0_i32_0 : i32, i32
  }
  func.func @transform_3(%arg0: i32) -> (i32, i32) {
    %c0_i32 = arith.constant 0 : i32
    %c0_i32_0 = arith.constant 0 : i32
    %c0_i32_1 = arith.constant 0 : i32
    return %c0_i32, %c0_i32_0 : i32, i32
  }
  func.func @transform_4(%arg0: i32) -> (i32, i32) {
    %c0_i32 = arith.constant 0 : i32
    %c0_i32_0 = arith.constant 0 : i32
    %c0_i32_1 = arith.constant 0 : i32
    return %c0_i32, %c0_i32_0 : i32, i32
  }
  func.func @transform_5(%arg0: i32) -> (i32, i32) {
    %c0_i32 = arith.constant 0 : i32
    %c0_i32_0 = arith.constant 0 : i32
    return %arg0, %c0_i32 : i32, i32
  }
}

</mosaic_0001>

<llo_original>
// kernel: residual_block.1
$region0: #{residual_block.1}
  #allocation0 [shape = 'u32[]', space=smem, size = 0x4, offset = 0x4, fixed_abs, tag = 'smem constant byte address 0x4 - core index']
  #allocation1 [shape = 'u32[144,128]{1,0:T(1,128)}', space=vmem, size = 0x12000, scoped, tag = 'internal scratch']
  %s0 = inlined_call_operand.vmem [shape: f32[8,128], index: 0, kind: input, shape index: {}]
  %s1 = inlined_call_operand.vmem [shape: bf16[128,128], index: 1, kind: input, shape index: {}]
  %s2 = inlined_call_operand.vmem [shape: f32[1,128], index: 2, kind: input, shape index: {}]
  %s3 = inlined_call_operand.vmem [shape: bf16[128,128], index: 3, kind: input, shape index: {}]
  %s4 = inlined_call_operand.vmem [shape: f32[1,128], index: 4, kind: input, shape index: {}]
  %s5 = inlined_call_operand.hbm [shape: f32[8,128], index: 5, kind: output, shape index: {}]
  %s6 = sld [smem:[#allocation0]]
  $region30: #{residual_block.1} parent=0
    _
  %s8 = ssub.s32 1, %s6
  %s9 = scalar_select 0, %s8, %s6
  $region1: #{residual_block.1} parent=0
    #allocation2 [shape = 'u8[4096]{0}', space=vmem, size = 0x1000, scoped, tag = 'output window, operand 0, single buffered']
    #allocation3 [shape = 's32[1]{0}', space=sflag, size = 0x4, scoped, tag = 'scoped memory for residual_block.1']
    %10 = vsyncpa [#allocation3], 0
    // Predicated region
    $region2: #{residual_block.1} parent=1 // pred_check
      _
    $region3: #{residual_block.1} parent=1 // pred_check_branch
      %12 = sbr.rel (0) target = $region5
    $region4: #{residual_block.1} parent=1 // pred_region
      _
    $region5: #{residual_block.1} parent=1 // pred_fallthru
      _
    // Predicated region
    $region6: #{residual_block.1} parent=1 // pred_check
      _
    $region7: #{residual_block.1} parent=1 // pred_check_branch
      %14 = sbr.rel (0) target = $region9
    $region8: #{residual_block.1} parent=1 // pred_region
      _
    $region9: #{residual_block.1} parent=1 // pred_fallthru
      _
    // Predicated region
    $region10: #{residual_block.1} parent=1 // pred_check
      _
    $region11: #{residual_block.1} parent=1 // pred_check_branch
      %16 = sbr.rel (0) target = $region13
    $region12: #{residual_block.1} parent=1 // pred_region
      _
    $region13: #{residual_block.1} parent=1 // pred_fallthru
      _
    // Predicated region
    $region14: #{residual_block.1} parent=1 // pred_check
      _
    $region15: #{residual_block.1} parent=1 // pred_check_branch
      %18 = sbr.rel (0) target = $region17
    $region16: #{residual_block.1} parent=1 // pred_region
      _
    $region17: #{residual_block.1} parent=1 // pred_fallthru
      _
    // Predicated region
    $region18: #{residual_block.1} parent=1 // pred_check
      _
    $region19: #{residual_block.1} parent=1 // pred_check_branch
      %20 = sbr.rel (0) target = $region21
    $region20: #{residual_block.1} parent=1 // pred_region
      _
    $region21: #{residual_block.1} parent=1 // pred_fallthru
      _
    %v22 = vld [vmem:[%s0] sm:$0xff]
    %v23 = vpack.c.bf16 %v22, %v22
    %v24 = vld [vmem:[%s1] sm:$0xf]
    %v25 = vld [vmem:[%s1 + $0x4] sm:$0xf]
    %v26 = vld [vmem:[%s1 + $0x8] sm:$0xf]
    %v27 = vld [vmem:[%s1 + $0xc] sm:$0xf]
    %v28 = vld [vmem:[%s1 + $0x10] sm:$0xf]
    %v29 = vld [vmem:[%s1 + $0x14] sm:$0xf]
    %v30 = vld [vmem:[%s1 + $0x18] sm:$0xf]
    %v31 = vld [vmem:[%s1 + $0x1c] sm:$0xf]
    %v32 = vld [vmem:[%s1 + $0x20] sm:$0xf]
    %v33 = vld [vmem:[%s1 + $0x24] sm:$0xf]
    %v34 = vld [vmem:[%s1 + $0x28] sm:$0xf]
    %v35 = vld [vmem:[%s1 + $0x2c] sm:$0xf]
    %v36 = vld [vmem:[%s1 + $0x30] sm:$0xf]
    %v37 = vld [vmem:[%s1 + $0x34] sm:$0xf]
    %v38 = vld [vmem:[%s1 + $0x38] sm:$0xf]
    %v39 = vld [vmem:[%s1 + $0x3c] sm:$0xf]
    %v40 = vld [vmem:[%s2] sm:$0x1]
    %v42 = vlaneseq
    %v43 = vshrl.u32 %v42, 7
    %v44 = vsub.s32 0, %v43
    %v45 = vrot.slane %v40, %v44
    %v63 = vunpack.c.l.b16 %v24
    %v64 = vunpack.c.l.b16 %v25
    %v65 = vunpack.c.l.b16 %v26
    %v66 = vunpack.c.l.b16 %v27
    %v67 = vunpack.c.l.b16 %v28
    %v68 = vunpack.c.l.b16 %v29
    %v69 = vunpack.c.l.b16 %v30
    %v70 = vunpack.c.l.b16 %v31
    %v71 = vunpack.c.l.b16 %v32
    %v72 = vunpack.c.l.b16 %v33
    %v73 = vunpack.c.l.b16 %v34
    %v74 = vunpack.c.l.b16 %v35
    %v75 = vunpack.c.l.b16 %v36
    %v76 = vunpack.c.l.b16 %v37
    %v77 = vunpack.c.l.b16 %v38
    %v78 = vunpack.c.l.b16 %v39
    %v79 = vpack.c.b16 %v64, %v63
    %v80 = vpack.c.b16 %v66, %v65
    %v81 = vpack.c.b16 %v68, %v67
    %v82 = vpack.c.b16 %v70, %v69
    %v83 = vpack.c.b16 %v72, %v71
    %v84 = vpack.c.b16 %v74, %v73
    %v85 = vpack.c.b16 %v76, %v75
    %v86 = vpack.c.b16 %v78, %v77
    %95 = vmatprep.subr.bf16.mxu0 0
    %96 = vmatpush1.bf16.msra.mxu0 %v79
    %97 = vmatprep.subr.bf16.mxu0 0
    %98 = vmatpush1.bf16.msra.mxu0 %v80
    %99 = vmatprep.subr.bf16.mxu0 0
    %100 = vmatpush1.bf16.msra.mxu0 %v81
    %101 = vmatprep.subr.bf16.mxu0 0
    %102 = vmatpush1.bf16.msra.mxu0 %v82
    %103 = vmatprep.subr.bf16.mxu0 0
    %104 = vmatpush1.bf16.msra.mxu0 %v83
    %105 = vmatprep.subr.bf16.mxu0 0
    %106 = vmatpush1.bf16.msra.mxu0 %v84
    %107 = vmatprep.subr.bf16.mxu0 0
    %108 = vmatpush1.bf16.msra.mxu0 %v85
    %109 = vmatprep.subr.bf16.mxu0 0
    %110 = vmatpush1.bf16.msra.mxu0 %v86
    %111 = vmatprep.subr.bf16.mxu0 0
    %112 = vmatpush1.bf16.msra.mxu0 0
    %113 = vmatprep.subr.bf16.mxu0 0
    %114 = vmatpush1.bf16.msra.mxu0 0
    %115 = vmatprep.subr.bf16.mxu0 0
    %116 = vmatpush1.bf16.msra.mxu0 0
    %117 = vmatprep.subr.bf16.mxu0 0
    %118 = vmatpush1.bf16.msra.mxu0 0
    %119 = vmatprep.subr.bf16.mxu0 0
    %120 = vmatpush1.bf16.msra.mxu0 0
    %121 = vmatprep.subr.bf16.mxu0 0
    %122 = vmatpush1.bf16.msra.mxu0 0
    %123 = vmatprep.subr.bf16.mxu0 0
    %124 = vmatpush1.bf16.msra.mxu0 0
    %125 = vmatprep.subr.bf16.mxu0 0
    %126 = vmatpush1.bf16.msra.mxu0 0
    %127 = vmatprep.mubr.bf16.mxu0 0
    %128 = vmatmul.mubr.bf16.gmra.mrb[0].mxu0 %v23
    %v129 = vpop.f32.mrb[0].mxu0
    %v130 = vadd.f32 %v45, %v129
    %v131 = vpop.f32.mrb[0].mxu0
    %v132 = vpop.f32.mrb[0].mxu0
    %v133 = vpop.f32.mrb[0].mxu0
    %134 = vdwg.mxu0
    %v135 = vmax.f32 %v130, 0.0
    %v136 = vpack.c.bf16 %v135, %v135
    %v137 = vld [vmem:[%s3] sm:$0xf]
    %v138 = vld [vmem:[%s3 + $0x4] sm:$0xf]
    %v139 = vld [vmem:[%s3 + $0x8] sm:$0xf]
    %v140 = vld [vmem:[%s3 + $0xc] sm:$0xf]
    %v141 = vld [vmem:[%s3 + $0x10] sm:$0xf]
    %v142 = vld [vmem:[%s3 + $0x14] sm:$0xf]
    %v143 = vld [vmem:[%s3 + $0x18] sm:$0xf]
    %v144 = vld [vmem:[%s3 + $0x1c] sm:$0xf]
    %v145 = vld [vmem:[%s3 + $0x20] sm:$0xf]
    %v146 = vld [vmem:[%s3 + $0x24] sm:$0xf]
    %v147 = vld [vmem:[%s3 + $0x28] sm:$0xf]
    %v148 = vld [vmem:[%s3 + $0x2c] sm:$0xf]
    %v149 = vld [vmem:[%s3 + $0x30] sm:$0xf]
    %v150 = vld [vmem:[%s3 + $0x34] sm:$0xf]
    %v151 = vld [vmem:[%s3 + $0x38] sm:$0xf]
    %v152 = vld [vmem:[%s3 + $0x3c] sm:$0xf]
    %v153 = vld [vmem:[%s4] sm:$0x1]
    %v155 = vlaneseq
    %v156 = vshrl.u32 %v155, 7
    %v157 = vsub.s32 0, %v156
    %v158 = vrot.slane %v153, %v157
    %v176 = vunpack.c.l.b16 %v137
    %v177 = vunpack.c.l.b16 %v138
    %v178 = vunpack.c.l.b16 %v139
    %v179 = vunpack.c.l.b16 %v140
    %v180 = vunpack.c.l.b16 %v141
    %v181 = vunpack.c.l.b16 %v142
    %v182 = vunpack.c.l.b16 %v143
    %v183 = vunpack.c.l.b16 %v144
    %v184 = vunpack.c.l.b16 %v145
    %v185 = vunpack.c.l.b16 %v146
    %v186 = vunpack.c.l.b16 %v147
    %v187 = vunpack.c.l.b16 %v148
    %v188 = vunpack.c.l.b16 %v149
    %v189 = vunpack.c.l.b16 %v150
    %v190 = vunpack.c.l.b16 %v151
    %v191 = vunpack.c.l.b16 %v152
    %v192 = vpack.c.b16 %v177, %v176
    %v193 = vpack.c.b16 %v179, %v178
    %v194 = vpack.c.b16 %v181, %v180
    %v195 = vpack.c.b16 %v183, %v182
    %v196 = vpack.c.b16 %v185, %v184
    %v197 = vpack.c.b16 %v187, %v186
    %v198 = vpack.c.b16 %v189, %v188
    %v199 = vpack.c.b16 %v191, %v190
    %208 = vmatprep.subr.bf16.mxu0 0
    %209 = vmatpush1.bf16.msra.mxu0 %v192
    %210 = vmatprep.subr.bf16.mxu0 0
    %211 = vmatpush1.bf16.msra.mxu0 %v193
    %212 = vmatprep.subr.bf16.mxu0 0
    %213 = vmatpush1.bf16.msra.mxu0 %v194
    %214 = vmatprep.subr.bf16.mxu0 0
    %215 = vmatpush1.bf16.msra.mxu0 %v195
    %216 = vmatprep.subr.bf16.mxu0 0
    %217 = vmatpush1.bf16.msra.mxu0 %v196
    %218 = vmatprep.subr.bf16.mxu0 0
    %219 = vmatpush1.bf16.msra.mxu0 %v197
    %220 = vmatprep.subr.bf16.mxu0 0
    %221 = vmatpush1.bf16.msra.mxu0 %v198
    %222 = vmatprep.subr.bf16.mxu0 0
    %223 = vmatpush1.bf16.msra.mxu0 %v199
    %224 = vmatprep.subr.bf16.mxu0 0
    %225 = vmatpush1.bf16.msra.mxu0 0
    %226 = vmatprep.subr.bf16.mxu0 0
    %227 = vmatpush1.bf16.msra.mxu0 0
    %228 = vmatprep.subr.bf16.mxu0 0
    %229 = vmatpush1.bf16.msra.mxu0 0
    %230 = vmatprep.subr.bf16.mxu0 0
    %231 = vmatpush1.bf16.msra.mxu0 0
    %232 = vmatprep.subr.bf16.mxu0 0
    %233 = vmatpush1.bf16.msra.mxu0 0
    %234 = vmatprep.subr.bf16.mxu0 0
    %235 = vmatpush1.bf16.msra.mxu0 0
    %236 = vmatprep.subr.bf16.mxu0 0
    %237 = vmatpush1.bf16.msra.mxu0 0
    %238 = vmatprep.subr.bf16.mxu0 0
    %239 = vmatpush1.bf16.msra.mxu0 0
    %240 = vmatprep.mubr.bf16.mxu0 0
    %241 = vmatmul.mubr.bf16.gmra.mrb[0].mxu0 %v136
    %v242 = vpop.f32.mrb[0].mxu0
    %v243 = vadd.f32 %v158, %v242
    %v244 = vpop.f32.mrb[0].mxu0
    %v245 = vpop.f32.mrb[0].mxu0
    %v246 = vpop.f32.mrb[0].mxu0
    %247 = vdwg.mxu0
    %v248 = vmax.f32 %v243, 0.0
    %v249 = vadd.f32 %v248, %v22
    %250 = vst [vmem:[#allocation2] sm:$0xff] %v249
    // Predicated region
    $region22: #{residual_block.1} parent=1 // pred_check
      _
    $region23: #{residual_block.1} parent=1 // pred_check_branch
      %252 = sbr.rel (0) target = $region25
    $region24: #{residual_block.1} parent=1 // pred_region
      %s254 = ssub.s32 128, 128
      %255 = vsyncadd [#allocation3], %s254
      %s257 = sshll.u32 [#allocation2], 4
      %s258 = int_to_ptr.vmem [resolvable:$true] %s257
      %260 = dma.vmem_to_hbm [thread:$0]  %s258, 128, %s5, [#allocation3]
    $region25: #{residual_block.1} parent=1 // pred_fallthru
      _
    // Predicated region
    $region26: #{residual_block.1} parent=1 // pred_check
      _
    $region27: #{residual_block.1} parent=1 // pred_check_branch
      %262 = sbr.rel (0) target = $region29
    $region28: #{residual_block.1} parent=1 // pred_region
      %263 = dma.done [#allocation3], 128
    $region29: #{residual_block.1} parent=1 // pred_fallthru
      _
    %264 = vsyncpa [#allocation3], 1

</llo_original>
